<compile_context>
chip_gen: v7x
topology: tpu7x:2x2x1
jax: 0.10.0
libtpu: 0.0.40
codegen_flags: <defaults>
</compile_context>

<pallas_src>
import functools

import jax
import jax.numpy as jnp
from jax import lax
from jax.experimental import pallas as pl
from jax.experimental.pallas import tpu as pltpu


def _ntxent_kernel(zi_ref, zj_col_ref, zj_pos_ref, loss_ref, m_sc, l_sc,
                   *, inv_temperature, eps, approx_reciprocal):
    j = pl.program_id(1)
    n_col = pl.num_programs(1)

    zi = zi_ref[...].astype(jnp.float32)        # (tm, D)  query rows
    zjc = zj_col_ref[...].astype(jnp.float32)   # (tn, D)  key rows (columns of sim)

    @pl.when(j == 0)
    def _():
        m_sc[...] = jnp.full_like(m_sc, -jnp.inf)
        l_sc[...] = jnp.zeros_like(l_sc)

    # Row norms (O(tile*D) elementwise + reduce).
    ni = jnp.sqrt(jnp.sum(zi * zi, axis=-1, keepdims=True))    # (tm, 1)
    nj = jnp.sqrt(jnp.sum(zjc * zjc, axis=-1, keepdims=True))  # (tn, 1)

    # MXU contraction over the shared feature axis — no explicit zj.T.
    dots = lax.dot_general(
        zi, zjc,
        dimension_numbers=(((1,), (1,)), ((), ())),
        preferred_element_type=jnp.float32)                    # (tm, tn)

    denom = jnp.maximum(ni * nj.T, eps)
    inv_denom = pl.reciprocal(denom, approx=approx_reciprocal)
    sim = dots * inv_denom * inv_temperature                   # logits (tm, tn)

    # Online logsumexp across column tiles (flash-style running max/sum).
    m_prev = m_sc[...]
    m_new = jnp.maximum(m_prev, jnp.max(sim, axis=-1, keepdims=True))
    l_sc[...] = (l_sc[...] * jnp.exp(m_prev - m_new)
                 + jnp.sum(jnp.exp(sim - m_new), axis=-1, keepdims=True))
    m_sc[...] = m_new

    @pl.when(j == n_col - 1)
    def _():
        # Positive logit for row a is cos(z_i[a], z_j[a]) / T — computed
        # directly from the row-aligned z_j block (O(tm*D), no BxB masking).
        zjp = zj_pos_ref[...].astype(jnp.float32)               # (tm, D)
        njp = jnp.sqrt(jnp.sum(zjp * zjp, axis=-1, keepdims=True))
        pos_denom = jnp.maximum(ni * njp, eps)
        pos = (jnp.sum(zi * zjp, axis=-1, keepdims=True)
               * pl.reciprocal(pos_denom, approx=approx_reciprocal)
               * inv_temperature)                               # (tm, 1)
        lse = m_sc[...] + jnp.log(l_sc[...])
        loss_ref[...] = lse - pos                               # per-row loss


def _pick_tile(n, candidates=(256, 128)):
    """Largest MXU-friendly tile that divides n; otherwise the full extent."""
    for t in candidates:
        if t <= n and n % t == 0:
            return t
    return n


def ntxent_loss(z_i, z_j, temperature=0.5, eps=1e-8, approx_reciprocal=True):
    """Pallas NT-Xent loss. z_i, z_j: (B, D). Returns scalar f32."""
    B, D = z_i.shape
    assert z_j.shape == (B, D)

    tm = _pick_tile(B)   # row tile   ("parallel" — megacore splits it on v7x)
    tn = _pick_tile(B)   # column tile ("arbitrary" — online-logsumexp reduction)
    nr, nc = B // tm, B // tn

    kernel = functools.partial(
        _ntxent_kernel,
        inv_temperature=float(1.0 / temperature),
        eps=float(eps),
        approx_reciprocal=approx_reciprocal,
    )

    per_row = pl.pallas_call(
        kernel,
        out_shape=jax.ShapeDtypeStruct((B, 1), jnp.float32),
        grid_spec=pltpu.PrefetchScalarGridSpec(
            num_scalar_prefetch=0,
            grid=(nr, nc),
            in_specs=[
                pl.BlockSpec((tm, D), lambda i, j: (i, 0)),   # z_i rows
                pl.BlockSpec((tn, D), lambda i, j: (j, 0)),   # z_j columns
                pl.BlockSpec((tm, D), lambda i, j: (i, 0)),   # z_j positives (row-aligned)
            ],
            out_specs=pl.BlockSpec((tm, 1), lambda i, j: (i, 0)),
            scratch_shapes=[
                pltpu.VMEM((tm, 1), jnp.float32),   # running max m
                pltpu.VMEM((tm, 1), jnp.float32),   # running sum l
            ],
        ),
        compiler_params=pltpu.CompilerParams(
            dimension_semantics=("parallel", "arbitrary"),
            vmem_limit_bytes=48 * 1024 * 1024,   # safe on v5e/v6e (128 MiB) and v7x (64 MiB)
        ),
        cost_estimate=pl.CostEstimate(
            flops=2 * B * B * D,
            transcendentals=B * B,
            bytes_accessed=3 * B * D * 4 + B * 4,
        ),
    )(z_i, z_j, z_j)

    # Tiny (B,1) mean kept outside the kernel so the "parallel" row axis never
    # needs a cross-tile scalar accumulator.
    return jnp.mean(per_row)


def _ntxent_ref(z_i, z_j, temperature=0.5, eps=1e-8):
    """Pure-JAX reference matching the PyTorch module."""
    dots = z_i @ z_j.T
    ni = jnp.linalg.norm(z_i, axis=-1, keepdims=True)
    nj = jnp.linalg.norm(z_j, axis=-1, keepdims=True)
    sim = dots / jnp.maximum(ni * nj.T, eps) / temperature
    labels = jnp.arange(z_i.shape[0])
    logp = sim - jax.scipy.special.logsumexp(sim, axis=-1, keepdims=True)
    return -jnp.mean(logp[jnp.arange(z_i.shape[0]), labels])


if __name__ == "__main__":
    key = jax.random.PRNGKey(0)

    # Case 1: small shape (single block path).
    k1, k2, k3, k4 = jax.random.split(key, 4)
    B, D = 8, 32
    z_i = jax.random.normal(k1, (B, D), dtype=jnp.float32)
    z_j = jax.random.normal(k2, (B, D), dtype=jnp.float32)

    ref = _ntxent_ref(z_i, z_j, temperature=0.5)

    # Exact-math mode: matches the reference tightly.
    loss_exact = ntxent_loss(z_i, z_j, temperature=0.5, approx_reciprocal=False)
    jax.block_until_ready(loss_exact)
    assert jnp.allclose(loss_exact, ref, atol=1e-5, rtol=1e-5), (loss_exact, ref)

    # Default fast mode: EUP approx reciprocal (~1e-4 relative error in logits).
    loss_fast = ntxent_loss(z_i, z_j, temperature=0.5)
    jax.block_until_ready(loss_fast)
    assert jnp.allclose(loss_fast, ref, atol=2e-3, rtol=2e-3), (loss_fast, ref)

    # Case 2: larger shape exercising the 2x2 tiled grid + online logsumexp.
    B2, D2 = 512, 64
    z_i2 = jax.random.normal(k3, (B2, D2), dtype=jnp.float32)
    z_j2 = jax.random.normal(k4, (B2, D2), dtype=jnp.float32)

    ref2 = _ntxent_ref(z_i2, z_j2, temperature=0.5)
    loss2 = ntxent_loss(z_i2, z_j2, temperature=0.5, approx_reciprocal=False)
    jax.block_until_ready(loss2)
    assert jnp.allclose(loss2, ref2, atol=1e-5, rtol=1e-5), (loss2, ref2)

    loss2_fast = ntxent_loss(z_i2, z_j2, temperature=0.5)
    jax.block_until_ready(loss2_fast)
    assert jnp.allclose(loss2_fast, ref2, atol=2e-3, rtol=2e-3), (loss2_fast, ref2)

    print("KERNEL_OK")
</pallas_src>

<mosaic_0001>
module attributes {stable_mosaic.version = 11 : i64} {
  func.func @_ntxent_kernel(%arg0: i32, %arg1: i32, %arg2: memref<8x32xf32, #tpu.memory_space<vmem>>, %arg3: memref<8x32xf32, #tpu.memory_space<vmem>>, %arg4: memref<8x32xf32, #tpu.memory_space<vmem>>, %arg5: memref<8x1xf32, #tpu.memory_space<vmem>>, %arg6: memref<8x1xf32, #tpu.memory_space<vmem>>, %arg7: memref<8x1xf32, #tpu.memory_space<vmem>>) attributes {dimension_semantics = [#tpu.dimension_semantics<parallel>, #tpu.dimension_semantics<arbitrary>], iteration_bounds = array<i64: 1, 1>, scalar_prefetch = 0 : i64, scratch_operands = 2 : i64, tpu.core_type = #tpu.core_type<tc>, window_params = [{transform_indices = @transform_0, window_bounds = array<i64: 8, 32>}, {transform_indices = @transform_1, window_bounds = array<i64: 8, 32>}, {transform_indices = @transform_2, window_bounds = array<i64: 8, 32>}, {transform_indices = @transform_3, window_bounds = array<i64: 8, 1>}]} {
    %c0 = arith.constant 0 : index
    %c0_0 = arith.constant 0 : index
    %0 = vector.load %arg2[%c0, %c0_0] : memref<8x32xf32, #tpu.memory_space<vmem>>, vector<8x32xf32>
    %c0_1 = arith.constant 0 : index
    %c0_2 = arith.constant 0 : index
    %1 = vector.load %arg3[%c0_1, %c0_2] : memref<8x32xf32, #tpu.memory_space<vmem>>, vector<8x32xf32>
    %c0_i32 = arith.constant 0 : i32
    %2 = arith.cmpi eq, %arg1, %c0_i32 : i32
    %3 = arith.extui %2 : i1 to i32
    %c0_i32_3 = arith.constant 0 : i32
    %4 = arith.cmpi ne, %3, %c0_i32_3 : i32
    scf.if %4 {
      %cst_20 = arith.constant 0xFF800000 : f32
      %43 = vector.broadcast %cst_20 : f32 to vector<8x1xf32>
      %c0_21 = arith.constant 0 : index
      %c0_22 = arith.constant 0 : index
      %44 = vector.load %arg6[%c0_21, %c0_22] : memref<8x1xf32, #tpu.memory_space<vmem>>, vector<8x1xf32>
      tpu.vector_store %arg6[%c0_21, %c0_22], %43 {strides = array<i32>} : memref<8x1xf32, #tpu.memory_space<vmem>>, vector<8x1xf32>,
      %cst_23 = arith.constant 0.000000e+00 : f32
      %45 = vector.broadcast %cst_23 : f32 to vector<8x1xf32>
      %c0_24 = arith.constant 0 : index
      %c0_25 = arith.constant 0 : index
      %46 = vector.load %arg7[%c0_24, %c0_25] : memref<8x1xf32, #tpu.memory_space<vmem>>, vector<8x1xf32>
      tpu.vector_store %arg7[%c0_24, %c0_25], %45 {strides = array<i32>} : memref<8x1xf32, #tpu.memory_space<vmem>>, vector<8x1xf32>,
    } else {
    }
    %5 = arith.mulf %0, %0 : vector<8x32xf32>
    %cst = arith.constant dense<0.000000e+00> : vector<8xf32>
    %6 = vector.multi_reduction <add>, %5, %cst [1] : vector<8x32xf32> to vector<8xf32>
    %7 = vector.shape_cast %6 : vector<8xf32> to vector<8x1xf32>
    %8 = math.sqrt %7 : vector<8x1xf32>
    %9 = arith.mulf %1, %1 : vector<8x32xf32>
    %cst_4 = arith.constant dense<0.000000e+00> : vector<8xf32>
    %10 = vector.multi_reduction <add>, %9, %cst_4 [1] : vector<8x32xf32> to vector<8xf32>
    %11 = vector.shape_cast %10 : vector<8xf32> to vector<8x1xf32>
    %12 = math.sqrt %11 : vector<8x1xf32>
    %cst_5 = arith.constant dense<0.000000e+00> : vector<8x8xf32>
    %13 = tpu.matmul %0, %1, %cst_5 {dimension_numbers = #tpu.dot_dimension_numbers<[1], [1], [0], [0], [0, 0, 1, 0], [], []>} : vector<8x32xf32>, vector<8x32xf32>, vector<8x8xf32> -> vector<8x8xf32>
    %14 = tpu.transpose %12, [1, 0] : vector<8x1xf32> -> vector<1x8xf32>
    %15 = vector.broadcast %8 : vector<8x1xf32> to vector<8x8xf32>
    %16 = vector.broadcast %14 : vector<1x8xf32> to vector<8x8xf32>
    %17 = arith.mulf %15, %16 : vector<8x8xf32>
    %cst_6 = arith.constant 9.99999993E-9 : f32
    %18 = vector.broadcast %cst_6 : f32 to vector<8x8xf32>
    %19 = arith.maximumf %17, %18 : vector<8x8xf32>
    %20 = tpu.reciprocal %19 : vector<8x8xf32> -> vector<8x8xf32>
    %21 = arith.mulf %13, %20 : vector<8x8xf32>
    %cst_7 = arith.constant 2.000000e+00 : f32
    %22 = vector.broadcast %cst_7 : f32 to vector<8x8xf32>
    %23 = arith.mulf %21, %22 : vector<8x8xf32>
    %c0_8 = arith.constant 0 : index
    %c0_9 = arith.constant 0 : index
    %24 = vector.load %arg6[%c0_8, %c0_9] : memref<8x1xf32, #tpu.memory_space<vmem>>, vector<8x1xf32>
    %cst_10 = arith.constant dense<0xFF800000> : vector<8xf32>
    %25 = vector.multi_reduction <maximumf>, %23, %cst_10 [1] : vector<8x8xf32> to vector<8xf32>
    %26 = vector.shape_cast %25 : vector<8xf32> to vector<8x1xf32>
    %27 = arith.maximumf %24, %26 : vector<8x1xf32>
    %c0_11 = arith.constant 0 : index
    %c0_12 = arith.constant 0 : index
    %28 = vector.load %arg7[%c0_11, %c0_12] : memref<8x1xf32, #tpu.memory_space<vmem>>, vector<8x1xf32>
    %29 = arith.subf %24, %27 : vector<8x1xf32>
    %30 = math.exp %29 : vector<8x1xf32>
    %31 = arith.mulf %28, %30 : vector<8x1xf32>
    %32 = vector.broadcast %27 : vector<8x1xf32> to vector<8x8xf32>
    %33 = arith.subf %23, %32 : vector<8x8xf32>
    %34 = math.exp %33 : vector<8x8xf32>
    %cst_13 = arith.constant dense<0.000000e+00> : vector<8xf32>
    %35 = vector.multi_reduction <add>, %34, %cst_13 [1] : vector<8x8xf32> to vector<8xf32>
    %36 = vector.shape_cast %35 : vector<8xf32> to vector<8x1xf32>
    %37 = arith.addf %31, %36 : vector<8x1xf32>
    %c0_14 = arith.constant 0 : index
    %c0_15 = arith.constant 0 : index
    %38 = vector.load %arg7[%c0_14, %c0_15] : memref<8x1xf32, #tpu.memory_space<vmem>>, vector<8x1xf32>
    tpu.vector_store %arg7[%c0_14, %c0_15], %37 {strides = array<i32>} : memref<8x1xf32, #tpu.memory_space<vmem>>, vector<8x1xf32>,
    %c0_16 = arith.constant 0 : index
    %c0_17 = arith.constant 0 : index
    %39 = vector.load %arg6[%c0_16, %c0_17] : memref<8x1xf32, #tpu.memory_space<vmem>>, vector<8x1xf32>
    tpu.vector_store %arg6[%c0_16, %c0_17], %27 {strides = array<i32>} : memref<8x1xf32, #tpu.memory_space<vmem>>, vector<8x1xf32>,
    %c0_i32_18 = arith.constant 0 : i32
    %40 = arith.cmpi eq, %arg1, %c0_i32_18 : i32
    %41 = arith.extui %40 : i1 to i32
    %c0_i32_19 = arith.constant 0 : i32
    %42 = arith.cmpi ne, %41, %c0_i32_19 : i32
    scf.if %42 {
      %c0_20 = arith.constant 0 : index
      %c0_21 = arith.constant 0 : index
      %43 = vector.load %arg4[%c0_20, %c0_21] : memref<8x32xf32, #tpu.memory_space<vmem>>, vector<8x32xf32>
      %44 = arith.mulf %43, %43 : vector<8x32xf32>
      %cst_22 = arith.constant dense<0.000000e+00> : vector<8xf32>
      %45 = vector.multi_reduction <add>, %44, %cst_22 [1] : vector<8x32xf32> to vector<8xf32>
      %46 = vector.shape_cast %45 : vector<8xf32> to vector<8x1xf32>
      %47 = math.sqrt %46 : vector<8x1xf32>
      %48 = arith.mulf %8, %47 : vector<8x1xf32>
      %cst_23 = arith.constant 9.99999993E-9 : f32
      %49 = vector.broadcast %cst_23 : f32 to vector<8x1xf32>
      %50 = arith.maximumf %48, %49 : vector<8x1xf32>
      %51 = arith.mulf %0, %43 : vector<8x32xf32>
      %cst_24 = arith.constant dense<0.000000e+00> : vector<8xf32>
      %52 = vector.multi_reduction <add>, %51, %cst_24 [1] : vector<8x32xf32> to vector<8xf32>
      %53 = vector.shape_cast %52 : vector<8xf32> to vector<8x1xf32>
      %54 = tpu.reciprocal %50 : vector<8x1xf32> -> vector<8x1xf32>
      %55 = arith.mulf %53, %54 : vector<8x1xf32>
      %cst_25 = arith.constant 2.000000e+00 : f32
      %56 = vector.broadcast %cst_25 : f32 to vector<8x1xf32>
      %57 = arith.mulf %55, %56 : vector<8x1xf32>
      %c0_26 = arith.constant 0 : index
      %c0_27 = arith.constant 0 : index
      %58 = vector.load %arg6[%c0_26, %c0_27] : memref<8x1xf32, #tpu.memory_space<vmem>>, vector<8x1xf32>
      %c0_28 = arith.constant 0 : index
      %c0_29 = arith.constant 0 : index
      %59 = vector.load %arg7[%c0_28, %c0_29] : memref<8x1xf32, #tpu.memory_space<vmem>>, vector<8x1xf32>
      %60 = math.log %59 : vector<8x1xf32>
      %61 = arith.addf %58, %60 : vector<8x1xf32>
      %62 = arith.subf %61, %57 : vector<8x1xf32>
      %c0_30 = arith.constant 0 : index
      %c0_31 = arith.constant 0 : index
      %63 = vector.load %arg5[%c0_30, %c0_31] : memref<8x1xf32, #tpu.memory_space<vmem>>, vector<8x1xf32>
      tpu.vector_store %arg5[%c0_30, %c0_31], %62 {strides = array<i32>} : memref<8x1xf32, #tpu.memory_space<vmem>>, vector<8x1xf32>,
    } else {
    }
    return
  }
  func.func @transform_0(%arg0: i32, %arg1: i32) -> (i32, i32) {
    %c0_i32 = arith.constant 0 : i32
    %c0_i32_0 = arith.constant 0 : i32
    return %arg0, %c0_i32 : i32, i32
  }
  func.func @transform_1(%arg0: i32, %arg1: i32) -> (i32, i32) {
    %c0_i32 = arith.constant 0 : i32
    %c0_i32_0 = arith.constant 0 : i32
    return %arg1, %c0_i32 : i32, i32
  }
  func.func @transform_2(%arg0: i32, %arg1: i32) -> (i32, i32) {
    %c0_i32 = arith.constant 0 : i32
    %c0_i32_0 = arith.constant 0 : i32
    return %arg0, %c0_i32 : i32, i32
  }
  func.func @transform_3(%arg0: i32, %arg1: i32) -> (i32, i32) {
    %c0_i32 = arith.constant 0 : i32
    %c0_i32_0 = arith.constant 0 : i32
    return %arg0, %c0_i32 : i32, i32
  }
}

</mosaic_0001>

<llo_original>
// kernel: tpu_custom_call.1
$region0: #{tpu_custom_call.1}
  #allocation0 [shape = 'u32[]', space=smem, size = 0x4, offset = 0x4, fixed_abs, tag = 'smem constant byte address 0x4 - core index']
  #allocation1 [shape = 'u32[144,128]{1,0:T(1,128)}', space=vmem, size = 0x12000, scoped, tag = 'internal scratch']
  #allocation2 [shape = 'f32[8,1]{1,0:T(8,128)}', space=vmem, size = 0x1000, scoped, tag = 'scratch operand']
  #allocation3 [shape = 'f32[8,1]{1,0:T(8,128)}', space=vmem, size = 0x1000, scoped, tag = 'scratch operand']
  %s0 = inlined_call_operand.hbm [shape: f32[8,32], index: 0, kind: input, shape index: {}]
  %s1 = inlined_call_operand.hbm [shape: f32[8,32], index: 1, kind: input, shape index: {}]
  %s2 = inlined_call_operand.hbm [shape: f32[8,32], index: 2, kind: input, shape index: {}]
  %s3 = inlined_call_operand.vmem [shape: f32[8,1], index: 3, kind: output, shape index: {}]
  %s4 = sld [smem:[#allocation0]]
  $region42: #{tpu_custom_call.1} parent=0
    _
  %s6 = ssub.s32 1, %s4
  %s7 = scalar_select 0, %s6, %s4
  $region1: #{tpu_custom_call.1} parent=0
    #allocation4 [shape = 'u8[4096]{0}', space=vmem, size = 0x1000, scoped, tag = 'input window, operand 0, single buffered']
    #allocation5 [shape = 's32[1]{0}', space=sflag, size = 0x4, scoped, tag = 'scoped memory for tpu_custom_call.1']
    #allocation6 [shape = 'u8[4096]{0}', space=vmem, size = 0x1000, scoped, tag = 'input window, operand 1, single buffered']
    #allocation7 [shape = 's32[1]{0}', space=sflag, size = 0x4, scoped, tag = 'scoped memory for tpu_custom_call.1']
    #allocation8 [shape = 'u8[4096]{0}', space=vmem, size = 0x1000, scoped, tag = 'input window, operand 2, single buffered']
    %8 = vsyncpa [#allocation5], 0
    %9 = vsyncpa [#allocation7], 0
    // Predicated region
    $region2: #{tpu_custom_call.1} parent=1 // pred_check
      _
    $region3: #{tpu_custom_call.1} parent=1 // pred_check_branch
      %11 = sbr.rel (0) target = $region5
    $region4: #{tpu_custom_call.1} parent=1 // pred_region
      %s13 = ssub.s32 128, 128
      %14 = vsyncadd [#allocation5], %s13
      %s16 = sshll.u32 [#allocation4], 4
      %s17 = int_to_ptr.vmem [resolvable:$true] %s16
      %19 = dma.hbm_to_vmem [thread:$0]  %s0, 128, %s17, [#allocation5]
    $region5: #{tpu_custom_call.1} parent=1 // pred_fallthru
      _
    // Predicated region
    $region6: #{tpu_custom_call.1} parent=1 // pred_check
      _
    $region7: #{tpu_custom_call.1} parent=1 // pred_check_branch
      %21 = sbr.rel (0) target = $region9
    $region8: #{tpu_custom_call.1} parent=1 // pred_region
      %s23 = ssub.s32 128, 128
      %24 = vsyncadd [#allocation7], %s23
      %s26 = sshll.u32 [#allocation6], 4
      %s27 = int_to_ptr.vmem [resolvable:$true] %s26
      %29 = dma.hbm_to_vmem [thread:$0]  %s1, 128, %s27, [#allocation7]
    $region9: #{tpu_custom_call.1} parent=1 // pred_fallthru
      _
    // Predicated region
    $region10: #{tpu_custom_call.1} parent=1 // pred_check
      _
    $region11: #{tpu_custom_call.1} parent=1 // pred_check_branch
      %31 = sbr.rel (0) target = $region13
    $region12: #{tpu_custom_call.1} parent=1 // pred_region
      %s33 = ssub.s32 128, 128
      %34 = vsyncadd [#allocation7], %s33
      %s36 = sshll.u32 [#allocation8], 4
      %s37 = int_to_ptr.vmem [resolvable:$true] %s36
      %39 = dma.hbm_to_vmem [thread:$0]  %s2, 128, %s37, [#allocation7]
    $region13: #{tpu_custom_call.1} parent=1 // pred_fallthru
      _
    // Predicated region
    $region14: #{tpu_custom_call.1} parent=1 // pred_check
      _
    $region15: #{tpu_custom_call.1} parent=1 // pred_check_branch
      %41 = sbr.rel (0) target = $region17
    $region16: #{tpu_custom_call.1} parent=1 // pred_region
      %42 = dma.done [#allocation5], 128
    $region17: #{tpu_custom_call.1} parent=1 // pred_fallthru
      _
    // Predicated region
    $region18: #{tpu_custom_call.1} parent=1 // pred_check
      _
    $region19: #{tpu_custom_call.1} parent=1 // pred_check_branch
      %44 = sbr.rel (0) target = $region21
    $region20: #{tpu_custom_call.1} parent=1 // pred_region
      %45 = dma.done [#allocation7], 128
    $region21: #{tpu_custom_call.1} parent=1 // pred_fallthru
      _
    // Predicated region
    $region22: #{tpu_custom_call.1} parent=1 // pred_check
      _
    $region23: #{tpu_custom_call.1} parent=1 // pred_check_branch
      %47 = sbr.rel (0) target = $region25
    $region24: #{tpu_custom_call.1} parent=1 // pred_region
      %48 = dma.done [#allocation7], 128
    $region25: #{tpu_custom_call.1} parent=1 // pred_fallthru
      _
    %v49 = vld [vmem:[#allocation4] sm:$0xff]
    %v50 = vld [vmem:[#allocation6] sm:$0xff]
    %p51 = scmp.eq.s32.totalorder 0, 0
    // Predicated region
    $region26: #{tpu_custom_call.1} parent=1 // pred_check
      %p52 = pneg %p51
    $region27: #{tpu_custom_call.1} parent=1 // pred_check_branch
      %54 = sbr.rel (%p52) target = $region29
    $region28: #{tpu_custom_call.1} parent=1 // pred_region
      %vm55 = vcmask 7168
      %56 = vst.msk [vmem:[#allocation2] sm:$0xff] %vm55, -inf
      %57 = vst.msk [vmem:[#allocation3] sm:$0xff] %vm55, 0.0
    $region29: #{tpu_custom_call.1} parent=1 // pred_fallthru
      _
    %v58 = vmul.f32 %v49, %v49
    %vm59 = vcmask 261120
    %v60 = vsel %vm59, %v58, 0.0
    %61 = vadd.xlane.f32.xlu0 %v60
    %v62 = vpop.xlane.xlu0 %61
    %v63 = vrsqrt.pop %v62
    %v64 = vmul.f32 %v62, %v63
    %vm65 = vcmp.eq.f32.partialorder %v62, inf
    %v66 = vsel %vm65, %v62, %v64
    %vm67 = vcmp.eq.f32.partialorder %v62, 0.0
    %v68 = vand.u32 %v62, 2147483648
    %v69 = vsel %vm67, %v68, %v66
    %v70 = vmul.f32 %v50, %v50
    %v71 = vsel %vm59, %v70, 0.0
    %72 = vadd.xlane.f32.xlu0 %v71
    %v73 = vpop.xlane.xlu0 %72
    %v74 = vrsqrt.pop %v73
    %v75 = vmul.f32 %v73, %v74
    %vm76 = vcmp.eq.f32.partialorder %v73, inf
    %v77 = vsel %vm76, %v73, %v75
    %vm78 = vcmp.eq.f32.partialorder %v73, 0.0
    %v79 = vand.u32 %v73, 2147483648
    %v80 = vsel %vm78, %v79, %v77
    %v82 = vsel %vm59, %v49, 0
    %v85 = vsel %vm59, %v50, 0
    %87 = vmatprep.subr.mxu0 0.0
    %88 = vmatpush1.xpose.msra.mxu0 %v85
    %89 = vmatprep.subr.mxu0 0.0
    %90 = vmatpush1.xpose.msra.mxu0 0.0
    %91 = vmatprep.subr.mxu0 0.0
    %92 = vmatpush1.xpose.msra.mxu0 0.0
    %93 = vmatprep.subr.mxu0 0.0
    %94 = vmatpush1.xpose.msra.mxu0 0.0
    %95 = vmatprep.subr.mxu0 0.0
    %96 = vmatpush1.xpose.msra.mxu0 0.0
    %97 = vmatprep.subr.mxu0 0.0
    %98 = vmatpush1.xpose.msra.mxu0 0.0
    %99 = vmatprep.subr.mxu0 0.0
    %100 = vmatpush1.xpose.msra.mxu0 0.0
    %101 = vmatprep.subr.mxu0 0.0
    %102 = vmatpush1.xpose.msra.mxu0 0.0
    %103 = vmatprep.subr.mxu0 0.0
    %104 = vmatpush1.xpose.msra.mxu0 0.0
    %105 = vmatprep.subr.mxu0 0.0
    %106 = vmatpush1.xpose.msra.mxu0 0.0
    %107 = vmatprep.subr.mxu0 0.0
    %108 = vmatpush1.xpose.msra.mxu0 0.0
    %109 = vmatprep.subr.mxu0 0.0
    %110 = vmatpush1.xpose.msra.mxu0 0.0
    %111 = vmatprep.subr.mxu0 0.0
    %112 = vmatpush1.xpose.msra.mxu0 0.0
    %113 = vmatprep.subr.mxu0 0.0
    %114 = vmatpush1.xpose.msra.mxu0 0.0
    %115 = vmatprep.subr.mxu0 0.0
    %116 = vmatpush1.xpose.msra.mxu0 0.0
    %117 = vmatprep.subr.mxu0 0.0
    %118 = vmatpush1.xpose.msra.mxu0 0.0
    %119 = vmatprep.subr.mxu0 0.0
    %120 = vmatpush1.xpose.msra.mxu0 0.0
    %121 = vmatprep.subr.mxu0 0.0
    %122 = vmatpush1.xpose.msra.mxu0 0.0
    %123 = vmatprep.subr.mxu0 0.0
    %124 = vmatpush1.xpose.msra.mxu0 0.0
    %125 = vmatprep.subr.mxu0 0.0
    %126 = vmatpush1.xpose.msra.mxu0 0.0
    %127 = vmatprep.subr.mxu0 0.0
    %128 = vmatpush1.xpose.msra.mxu0 0.0
    %129 = vmatprep.subr.mxu0 0.0
    %130 = vmatpush1.xpose.msra.mxu0 0.0
    %131 = vmatprep.subr.mxu0 0.0
    %132 = vmatpush1.xpose.msra.mxu0 0.0
    %133 = vmatprep.subr.mxu0 0.0
    %134 = vmatpush1.xpose.msra.mxu0 0.0
    %135 = vmatprep.subr.mxu0 0.0
    %136 = vmatpush1.xpose.msra.mxu0 0.0
    %137 = vmatprep.subr.mxu0 0.0
    %138 = vmatpush1.xpose.msra.mxu0 0.0
    %139 = vmatprep.subr.mxu0 0.0
    %140 = vmatpush1.xpose.msra.mxu0 0.0
    %141 = vmatprep.subr.mxu0 0.0
    %142 = vmatpush1.xpose.msra.mxu0 0.0
    %143 = vmatprep.subr.mxu0 0.0
    %144 = vmatpush1.xpose.msra.mxu0 0.0
    %145 = vmatprep.subr.mxu0 0.0
    %146 = vmatpush1.xpose.msra.mxu0 0.0
    %147 = vmatprep.subr.mxu0 0.0
    %148 = vmatpush1.xpose.msra.mxu0 0.0
    %149 = vmatprep.subr.mxu0 0.0
    %150 = vmatpush1.xpose.msra.mxu0 0.0
    %151 = vmatprep.mubr.f32.mxu0 0.0
    %152 = vmatmul.mubr.f32.gmra.mrb[0].mxu0 %v82
    %v153 = vpop.f32.mrb[0].mxu0
    %v154 = vadd.f32 0.0, %v153
    %v155 = vpop.f32.mrb[0].mxu0
    %156 = vdwg.mxu0
    %157 = vxpose.xlu0.b32.start [1/16] %v80, 128
    %158 = vxpose.xlu0.b32.cont [2/16] 0.0, 128
    %159 = vxpose.xlu0.b32.cont [3/16] 0.0, 128
    %160 = vxpose.xlu0.b32.cont [4/16] 0.0, 128
    %161 = vxpose.xlu0.b32.cont [5/16] 0.0, 128
    %162 = vxpose.xlu0.b32.cont [6/16] 0.0, 128
    %163 = vxpose.xlu0.b32.cont [7/16] 0.0, 128
    %164 = vxpose.xlu0.b32.cont [8/16] 0.0, 128
    %165 = vxpose.xlu0.b32.cont [9/16] 0.0, 128
    %166 = vxpose.xlu0.b32.cont [10/16] 0.0, 128
    %167 = vxpose.xlu0.b32.cont [11/16] 0.0, 128
    %168 = vxpose.xlu0.b32.cont [12/16] 0.0, 128
    %169 = vxpose.xlu0.b32.cont [13/16] 0.0, 128
    %170 = vxpose.xlu0.b32.cont [14/16] 0.0, 128
    %171 = vxpose.xlu0.b32.cont [15/16] 0.0, 128
    %172 = vxpose.xlu0.b32.end [16/16] 0.0, 128
    %v173 = vpop.trf.xlu0
    %v174 = vpop.trf.xlu0
    %v175 = vpop.trf.xlu0
    %v176 = vpop.trf.xlu0
    %v177 = vpop.trf.xlu0
    %v178 = vpop.trf.xlu0
    %v179 = vpop.trf.xlu0
    %v180 = vpop.trf.xlu0
    %v181 = vpop.trf.xlu0
    %v182 = vpop.trf.xlu0
    %v183 = vpop.trf.xlu0
    %v184 = vpop.trf.xlu0
    %v185 = vpop.trf.xlu0
    %v186 = vpop.trf.xlu0
    %v187 = vpop.trf.xlu0
    %v188 = vpop.trf.xlu0
    %v189 = vlaneseq
    %v190 = vshrl.u32 %v189, 7
    %v191 = vsub.s32 0, %v190
    %v192 = vrot.slane %v173, %v191
    %v193 = vmul.f32 %v69, %v192
    %v194 = vmax.f32 %v193, 1e-08
    %v195 = vrcp.pop %v194
    %v196 = vmul.f32 %v154, %v195
    %v197 = vmul.f32 %v196, 2.0
    %v198 = vld [vmem:[#allocation2] sm:$0xff]
    %vm199 = vcmask 64512
    %v200 = vsel %vm199, %v197, -inf
    %201 = vmax.xlane.f32.xlu0 %v200
    %v202 = vpop.xlane.xlu0 %201
    %v203 = vmax.f32 %v198, %v202
    %v204 = vld [vmem:[#allocation3] sm:$0xff]
    %v205 = vsub.f32 %v198, %v203
    %v206 = vmul.f32 %v205, 1.442695
    %v207 = vpow.pop %v206
    %v208 = vmul.f32 %v204, %v207
    %210 = vset.pattern.permute.xlu0 0
    %211 = vperm.xlu0 %210, %v203
    %v212 = vpop.permute.xlu0 %211
    %v214 = vsub.f32 %v197, %v212
    %v215 = vmul.f32 %v214, 1.442695
    %v216 = vpow.pop %v215
    %v217 = vsel %vm199, %v216, 0.0
    %218 = vadd.xlane.f32.xlu0 %v217
    %v219 = vpop.xlane.xlu0 %218
    %v220 = vadd.f32 %v208, %v219
    %vm221 = vcmask 7168
    %222 = vst.msk [vmem:[#allocation3] sm:$0xff] %vm221, %v220
    %223 = vst.msk [vmem:[#allocation2] sm:$0xff] %vm221, %v203
    // Predicated region
    $region30: #{tpu_custom_call.1} parent=1 // pred_check
      %p224 = pneg %p51
    $region31: #{tpu_custom_call.1} parent=1 // pred_check_branch
      %226 = sbr.rel (%p224) target = $region33
    $region32: #{tpu_custom_call.1} parent=1 // pred_region
      %v227 = vld [vmem:[#allocation8] sm:$0xff]
      %v228 = vmul.f32 %v227, %v227
      %v229 = vsel %vm59, %v228, 0.0
      %230 = vadd.xlane.f32.xlu0 %v229
      %v231 = vpop.xlane.xlu0 %230
      %v232 = vrsqrt.pop %v231
      %v233 = vmul.f32 %v231, %v232
      %vm234 = vcmp.eq.f32.partialorder %v231, inf
      %v235 = vsel %vm234, %v231, %v233
      %vm236 = vcmp.eq.f32.partialorder %v231, 0.0
      %v237 = vand.u32 %v231, 2147483648
      %v238 = vsel %vm236, %v237, %v235
      %v239 = vmul.f32 %v69, %v238
      %v240 = vmax.f32 %v239, 1e-08
      %v241 = vmul.f32 %v49, %v227
      %v242 = vsel %vm59, %v241, 0.0
      %243 = vadd.xlane.f32.xlu0 %v242
      %v244 = vpop.xlane.xlu0 %243
      %v245 = vrcp.pop %v240
      %v246 = vmul.f32 %v244, %v245
      %v247 = vmul.f32 %v246, 2.0
      %v248 = vld [vmem:[#allocation2] sm:$0xff]
      %v249 = vld [vmem:[#allocation3] sm:$0xff]
      %v250 = vlog2.pop %v249
      %v251 = vmul.f32 %v250, 0.6931472
      %v252 = vadd.f32 %v248, %v251
      %v253 = vsub.f32 %v252, %v247
      %254 = vst.msk [vmem:[%s3] sm:$0xff] %vm221, %v253
    $region33: #{tpu_custom_call.1} parent=1 // pred_fallthru
      _
    // Predicated region
    $region34: #{tpu_custom_call.1} parent=1 // pred_check
      _
    $region35: #{tpu_custom_call.1} parent=1 // pred_check_branch
      %256 = sbr.rel (0) target = $region37
    $region36: #{tpu_custom_call.1} parent=1 // pred_region
      _
    $region37: #{tpu_custom_call.1} parent=1 // pred_fallthru
      _
    // Predicated region
    $region38: #{tpu_custom_call.1} parent=1 // pred_check
      _
    $region39: #{tpu_custom_call.1} parent=1 // pred_check_branch
      %258 = sbr.rel (0) target = $region41
    $region40: #{tpu_custom_call.1} parent=1 // pred_region
      _
    $region41: #{tpu_custom_call.1} parent=1 // pred_fallthru
      _
    %259 = vsyncpa [#allocation5], 1
    %260 = vsyncpa [#allocation7], 1

</llo_original>
